<compile_context>
chip_gen: v7x
topology: tpu7x:2x2x1
jax: 0.10.0
libtpu: 0.0.40
codegen_flags: <defaults>
</compile_context>

<pallas_src>
import functools

import jax
import jax.numpy as jnp
from jax.experimental import pallas as pl
from jax.experimental.pallas import tpu as pltpu

LANES = 128
SUBLANES = 8


def _scale_nop_kernel(n_op, scalar_ref, x_ref, o_ref):
    """Elementwise hot path: repeat the bf16 multiply N_op times on the VPU."""
    # Read + cast the scalar once, splat once, reuse across the unrolled chain.
    s = scalar_ref[0].astype(jnp.bfloat16)
    s_splat = jnp.broadcast_to(s, x_ref.shape)
    acc = x_ref[...]
    # n_op is static -> fully unrolled chain of bf16 vmuls (matches the
    # Gaudi TPC kernel which issues N chained scale ops).
    for _ in range(n_op):
        acc = acc * s_splat
    o_ref[...] = acc


def custom_scale_nop(x, scalar, n_op, *, target_block_bytes=2 << 20):
    """JAX wrapper mirroring CustomScaleNOp.forward(inputA, scalar, N_op)."""
    assert x.dtype == jnp.bfloat16, "custom_scale_Nop is bf16 only"
    n_op = int(n_op)

    orig_shape = x.shape
    n_elems = x.size

    flat = x.reshape(-1)
    pad = (-n_elems) % (SUBLANES * LANES)
    if pad:
        # Ragged tail only: pad once.  Aligned sizes skip this copy entirely.
        flat = jnp.pad(flat, (0, pad))
    n_padded = flat.size

    # Lane-dense 2D view: widest multiple-of-128 last dim that divides size.
    cols = LANES
    for c in (1024, 512, 256):
        if n_padded % c == 0:
            cols = c
            break
    rows = n_padded // cols
    x2d = flat.reshape(rows, cols)

    # ~target_block_bytes of bf16 per tile, multiple of 8 sublanes.  Keep at
    # least 4 grid steps when there is enough data (v7x megacore sharding).
    bytes_per_row = cols * 2
    block_rows = max(
        SUBLANES,
        (target_block_bytes // bytes_per_row) // SUBLANES * SUBLANES,
    )
    if rows >= 4 * SUBLANES:
        block_rows = min(
            block_rows, max(SUBLANES, (rows // 4) // SUBLANES * SUBLANES)
        )
    block_rows = min(block_rows, rows)

    grid = (pl.cdiv(rows, block_rows),)

    scalar_arr = jnp.full((1,), scalar, dtype=jnp.float32)

    out2d = pl.pallas_call(
        functools.partial(_scale_nop_kernel, n_op),
        out_shape=jax.ShapeDtypeStruct((rows, cols), jnp.bfloat16),
        grid=grid,
        in_specs=[
            pl.BlockSpec(memory_space=pltpu.SMEM),               # scalar
            pl.BlockSpec((block_rows, cols), lambda i: (i, 0)),  # input tile
        ],
        out_specs=pl.BlockSpec((block_rows, cols), lambda i: (i, 0)),
        compiler_params=pltpu.CompilerParams(
            dimension_semantics=("parallel",)),
    )(scalar_arr, x2d)

    if pad:
        return out2d.reshape(-1)[:n_elems].reshape(orig_shape)
    return out2d.reshape(orig_shape)


def _reference(x, scalar, n_op):
    """Chained bf16 multiplies (matches the Gaudi op semantics)."""
    s_bf16 = jnp.bfloat16(scalar)
    ref = x
    for _ in range(n_op):
        ref = (ref * s_bf16).astype(jnp.bfloat16)
    return ref


if __name__ == "__main__":
    key = jax.random.PRNGKey(0)
    scalar = 1.5
    n_op = 4

    # Small NCHW-like input, consistent with the microbenchmark usage
    # (vreg-aligned -> no-pad fast path).
    x = jax.random.normal(key, (2, 4, 16, 16), dtype=jnp.float32).astype(
        jnp.bfloat16)
    out = jax.block_until_ready(custom_scale_nop(x, scalar, n_op))
    ref = _reference(x, scalar, n_op)
    assert out.shape == x.shape and out.dtype == jnp.bfloat16
    assert jnp.allclose(out.astype(jnp.float32), ref.astype(jnp.float32),
                        rtol=2e-2, atol=2e-2)

    # Larger aligned input: exercises multi-tile grid (grid >= 4).
    k1, k2 = jax.random.split(key)
    x_big = jax.random.normal(k1, (8, 16, 64, 64), dtype=jnp.float32).astype(
        jnp.bfloat16)
    out_big = jax.block_until_ready(custom_scale_nop(x_big, scalar, n_op))
    ref_big = _reference(x_big, scalar, n_op)
    assert jnp.allclose(out_big.astype(jnp.float32),
                        ref_big.astype(jnp.float32), rtol=2e-2, atol=2e-2)

    # Ragged size: exercises the pad path.
    x_rag = jax.random.normal(k2, (3, 5, 7, 9), dtype=jnp.float32).astype(
        jnp.bfloat16)
    out_rag = jax.block_until_ready(custom_scale_nop(x_rag, scalar, n_op))
    ref_rag = _reference(x_rag, scalar, n_op)
    assert out_rag.shape == x_rag.shape and out_rag.dtype == jnp.bfloat16
    assert jnp.allclose(out_rag.astype(jnp.float32),
                        ref_rag.astype(jnp.float32), rtol=2e-2, atol=2e-2)

    print("KERNEL_OK")
</pallas_src>

<mosaic_0001>
module attributes {stable_mosaic.version = 11 : i64} {
  func.func @_scale_nop_kernel(%arg0: i32, %arg1: memref<1xf32, #tpu.memory_space<smem>>, %arg2: memref<2x1024xbf16, #tpu.memory_space<vmem>>, %arg3: memref<2x1024xbf16, #tpu.memory_space<vmem>>) attributes {dimension_semantics = [#tpu.dimension_semantics<parallel>], iteration_bounds = array<i64: 1>, scalar_prefetch = 0 : i64, scratch_operands = 0 : i64, tpu.core_type = #tpu.core_type<tc>, window_params = [{transform_indices = @transform_0, window_bounds = array<i64: 1>}, {transform_indices = @transform_1, window_bounds = array<i64: 2, 1024>}, {transform_indices = @transform_2, window_bounds = array<i64: 2, 1024>}]} {
    %c0 = arith.constant 0 : index
    %0 = memref.load %arg1[%c0] : memref<1xf32, #tpu.memory_space<smem>>
    %1 = arith.truncf %0 : f32 to bf16
    %2 = vector.broadcast %1 : bf16 to vector<2x1024xbf16>
    %c0_0 = arith.constant 0 : index
    %c0_1 = arith.constant 0 : index
    %3 = vector.load %arg2[%c0_0, %c0_1] : memref<2x1024xbf16, #tpu.memory_space<vmem>>, vector<2x1024xbf16>
    %4 = arith.mulf %3, %2 : vector<2x1024xbf16>
    %5 = arith.mulf %4, %2 : vector<2x1024xbf16>
    %6 = arith.mulf %5, %2 : vector<2x1024xbf16>
    %7 = arith.mulf %6, %2 : vector<2x1024xbf16>
    %c0_2 = arith.constant 0 : index
    %c0_3 = arith.constant 0 : index
    %8 = vector.load %arg3[%c0_2, %c0_3] : memref<2x1024xbf16, #tpu.memory_space<vmem>>, vector<2x1024xbf16>
    tpu.vector_store %arg3[%c0_2, %c0_3], %7 {strides = array<i32>} : memref<2x1024xbf16, #tpu.memory_space<vmem>>, vector<2x1024xbf16>,
    return
  }
  func.func @transform_0(%arg0: i32) -> i32 {
    %c0_i32 = arith.constant 0 : i32
    %c0_i32_0 = arith.constant 0 : i32
    return %c0_i32 : i32
  }
  func.func @transform_1(%arg0: i32) -> (i32, i32) {
    %c0_i32 = arith.constant 0 : i32
    %c0_i32_0 = arith.constant 0 : i32
    return %arg0, %c0_i32 : i32, i32
  }
  func.func @transform_2(%arg0: i32) -> (i32, i32) {
    %c0_i32 = arith.constant 0 : i32
    %c0_i32_0 = arith.constant 0 : i32
    return %arg0, %c0_i32 : i32, i32
  }
}

</mosaic_0001>

<llo_original>
// kernel: tpu_custom_call.1
$region0: #{tpu_custom_call.1}
  #allocation0 [shape = 'u32[]', space=smem, size = 0x4, offset = 0x4, fixed_abs, tag = 'smem constant byte address 0x4 - core index']
  #allocation1 [shape = 'u32[144,128]{1,0:T(1,128)}', space=vmem, size = 0x12000, scoped, tag = 'internal scratch']
  #allocation2 [shape = 'f32[1]{0:T(128)S(6)}', space=smem, size = 0x200, scoped, tag = 'scoped memory for tpu_custom_call.1']
  %s0 = inlined_call_operand.<no memory space> [shape: f32[1], index: 0, kind: input, shape index: {}]
  %s1 = inlined_call_operand.hbm [shape: bf16[2,1024], index: 1, kind: input, shape index: {}]
  %s2 = inlined_call_operand.hbm [shape: bf16[2,1024], index: 2, kind: output, shape index: {}]
  %s3 = sld [smem:[#allocation0]]
  $region22: #{tpu_custom_call.1} parent=0
    _
  %s5 = ssub.s32 1, %s3
  %s6 = scalar_select 0, %s5, %s3
  %7 = sst [smem:[#allocation2]] %s0
  $region1: #{tpu_custom_call.1} parent=0
    #allocation3 [shape = 'u8[4096]{0}', space=vmem, size = 0x1000, scoped, tag = 'input window, operand 1, single buffered']
    #allocation4 [shape = 's32[1]{0}', space=sflag, size = 0x4, scoped, tag = 'scoped memory for tpu_custom_call.1']
    #allocation5 [shape = 's32[1]{0}', space=sflag, size = 0x4, scoped, tag = 'scoped memory for tpu_custom_call.1']
    #allocation6 [shape = 'u8[4096]{0}', space=vmem, size = 0x1000, scoped, tag = 'output window, operand 0, single buffered']
    %8 = vsyncpa [#allocation4], 0
    %9 = vsyncpa [#allocation5], 0
    // Predicated region
    $region2: #{tpu_custom_call.1} parent=1 // pred_check
      _
    $region3: #{tpu_custom_call.1} parent=1 // pred_check_branch
      %11 = sbr.rel (0) target = $region5
    $region4: #{tpu_custom_call.1} parent=1 // pred_region
      _
    $region5: #{tpu_custom_call.1} parent=1 // pred_fallthru
      _
    // Predicated region
    $region6: #{tpu_custom_call.1} parent=1 // pred_check
      _
    $region7: #{tpu_custom_call.1} parent=1 // pred_check_branch
      %13 = sbr.rel (0) target = $region9
    $region8: #{tpu_custom_call.1} parent=1 // pred_region
      %s15 = ssub.s32 128, 128
      %16 = vsyncadd [#allocation4], %s15
      %s18 = sshll.u32 [#allocation3], 4
      %s19 = int_to_ptr.vmem [resolvable:$true] %s18
      %21 = dma.hbm_to_vmem [thread:$0]  %s1, 128, %s19, [#allocation4]
    $region9: #{tpu_custom_call.1} parent=1 // pred_fallthru
      _
    // Predicated region
    $region10: #{tpu_custom_call.1} parent=1 // pred_check
      _
    $region11: #{tpu_custom_call.1} parent=1 // pred_check_branch
      %23 = sbr.rel (0) target = $region13
    $region12: #{tpu_custom_call.1} parent=1 // pred_region
      %24 = dma.done [#allocation4], 128
    $region13: #{tpu_custom_call.1} parent=1 // pred_fallthru
      _
    %s25 = sld [smem:[#allocation2]]
    %p27 = scmp.ne.f32.partialorder %s25, %s25
    %s28 = sshrl.u32 %s25, 16
    %s29 = sand.u32 %s28, 1
    %s30 = sadd.s32 32767, %s29
    %s31 = sadd.s32 %s25, %s30
    %s32 = sand.u32 %s31, 4294901760
    %s33 = scalar_select %p27, 2143289344, %s32
    %s35 = sshrl.u32 %s33, 16
    %s36 = sshll.u32 %s35, 16
    %s37 = sor.u32 %s35, %s36
    %v38 = vstv %s37
    %v40 = vld [vmem:[#allocation3] sm:$0xff]
    %v41 = vmul.bf16 %v40, %v38
    %v42 = vmul.bf16 %v41, %v38
    %v43 = vmul.bf16 %v42, %v38
    %v44 = vmul.bf16 %v43, %v38
    %45 = vst [vmem:[#allocation6] sm:$0xff] %v44
    // Predicated region
    $region14: #{tpu_custom_call.1} parent=1 // pred_check
      _
    $region15: #{tpu_custom_call.1} parent=1 // pred_check_branch
      %47 = sbr.rel (0) target = $region17
    $region16: #{tpu_custom_call.1} parent=1 // pred_region
      %s49 = ssub.s32 128, 128
      %50 = vsyncadd [#allocation5], %s49
      %s52 = sshll.u32 [#allocation6], 4
      %s53 = int_to_ptr.vmem [resolvable:$true] %s52
      %55 = dma.vmem_to_hbm [thread:$0]  %s53, 128, %s2, [#allocation5]
    $region17: #{tpu_custom_call.1} parent=1 // pred_fallthru
      _
    // Predicated region
    $region18: #{tpu_custom_call.1} parent=1 // pred_check
      _
    $region19: #{tpu_custom_call.1} parent=1 // pred_check_branch
      %57 = sbr.rel (0) target = $region21
    $region20: #{tpu_custom_call.1} parent=1 // pred_region
      %58 = dma.done [#allocation5], 128
    $region21: #{tpu_custom_call.1} parent=1 // pred_fallthru
      _
    %59 = vsyncpa [#allocation4], 1
    %60 = vsyncpa [#allocation5], 1

</llo_original>
